<compile_context>
chip_gen: v5e
topology: v5e:2x2
jax: 0.10.0
libtpu: 0.0.40
codegen_flags: <defaults>
</compile_context>

<pallas_src>
import functools
import math

import jax
import jax.numpy as jnp
from jax import lax
from jax.experimental import pallas as pl
from jax.experimental.pallas import tpu as pltpu


def mha_kernel(x_ref, wqkv_ref, wp_ref, bp_ref, o_ref, *,
               num_heads, head_size, scale):
    # x_ref:    (1, T, C)   current batch row (f32)
    # wqkv_ref: (C, 3C)     fused [Q | K | V] weights (bf16), head-major inside each C block
    # wp_ref:   (C, C)      output projection weight, stored transposed (bf16)
    # bp_ref:   (1, C)      output projection bias (f32)
    # o_ref:    (1, T, C)   output block for this batch row
    T = x_ref.shape[1]
    C = x_ref.shape[2]
    H, D = num_heads, head_size

    x = x_ref[0].astype(jnp.bfloat16)                                    # (T, C)

    # One wide fused QKV matmul on the MXU, f32 accumulation.
    qkv = jnp.dot(x, wqkv_ref[...], preferred_element_type=jnp.float32)  # (T, 3C)

    # Fold the softmax scale into q (cheap: O(T*C), not O(T*T)).
    q_all = (qkv[:, :C] * scale).astype(jnp.bfloat16)
    k_all = qkv[:, C:2 * C].astype(jnp.bfloat16)
    v_all = qkv[:, 2 * C:].astype(jnp.bfloat16)

    # Causal mask, computed once and shared by all heads.
    row = lax.broadcasted_iota(jnp.int32, (T, T), 0)
    col = lax.broadcasted_iota(jnp.int32, (T, T), 1)
    causal = col <= row

    head_outs = []
    for h in range(H):                       # static, unrolled; H is small
        sl = slice(h * D, (h + 1) * D)
        q = q_all[:, sl]                     # (T, D) bf16 (already scaled)
        k = k_all[:, sl]
        v = v_all[:, sl]

        # q @ k^T without materializing an explicit transpose of k.
        scores = lax.dot_general(
            q, k, dimension_numbers=(((1,), (1,)), ((), ())),
            preferred_element_type=jnp.float32)                          # (T, T) f32

        scores = jnp.where(causal, scores, -jnp.inf)

        # Softmax statistics stay in f32 (numerics + v5e has no bf16 VPU/EUP).
        m = jnp.max(scores, axis=-1, keepdims=True)
        p = jnp.exp(scores - m)                                          # (T, T) f32
        l = jnp.sum(p, axis=-1, keepdims=True)                           # (T, 1) f32
        # TODO(synk): attention-weight dropout (training mode) not implemented.

        pv = jnp.dot(p.astype(jnp.bfloat16), v,
                     preferred_element_type=jnp.float32)                 # (T, D) f32
        # Normalize AFTER P@V; reciprocal goes to the EUP slot.
        head_outs.append(pv * pl.reciprocal(l, approx=True))

    cat = jnp.concatenate(head_outs, axis=-1).astype(jnp.bfloat16)       # (T, C)

    # Single full-depth projection with the resident (C, C) weight.
    proj = jnp.dot(cat, wp_ref[...], preferred_element_type=jnp.float32)  # (T, C)
    # TODO(synk): output dropout (training mode) not implemented (identity in eval).
    o_ref[0] = (proj + bp_ref[...]).astype(o_ref.dtype)


@functools.partial(jax.jit, static_argnames=("num_heads",))
def multi_head_attention(x, wqkv, wp, bp, num_heads):
    """x: (B, T, n_embd) -> (B, T, n_embd).

    wqkv: (n_embd, 3*n_embd)  fused [Q | K | V] weights, stored transposed,
                              head-major within each n_embd column block.
    wp:   (n_embd, n_embd)    projection weight, stored transposed (= W.T).
    bp:   (n_embd,)           projection bias.
    """
    B, T, C = x.shape
    assert C % num_heads == 0, "num_heads must divide n_embd"
    D = C // num_heads
    scale = C ** -0.5          # spec: C ** (-0.5) with C = n_embd

    # bf16 weights: halves DMA bytes and resident VMEM; f32 MXU accumulation
    # keeps the result accurate.
    wqkv_bf = wqkv.astype(jnp.bfloat16)
    wp_bf = wp.astype(jnp.bfloat16)
    bp_r = bp.reshape(1, C).astype(jnp.float32)

    flops = (B * 2 * T * C * (3 * C)            # fused QKV
             + B * num_heads * 4 * T * T * D    # scores + P@V
             + B * 2 * T * C * C)               # projection
    bytes_accessed = (x.size * 4                 # x (f32)
                      + wqkv_bf.size * 2 + wp_bf.size * 2  # bf16 weights, once
                      + bp_r.size * 4
                      + B * T * C * 4)           # output (f32)

    kernel = functools.partial(mha_kernel, num_heads=num_heads,
                               head_size=D, scale=scale)

    out = pl.pallas_call(
        kernel,
        out_shape=jax.ShapeDtypeStruct((B, T, C), x.dtype),
        grid_spec=pltpu.PrefetchScalarGridSpec(
            num_scalar_prefetch=0,
            grid=(B,),
            in_specs=[
                pl.BlockSpec((1, T, C), lambda b: (b, 0, 0)),   # x row
                pl.BlockSpec((C, 3 * C), lambda b: (0, 0)),     # Wqkv, resident
                pl.BlockSpec((C, C), lambda b: (0, 0)),         # Wproj, resident
                pl.BlockSpec((1, C), lambda b: (0, 0)),         # bproj, resident
            ],
            out_specs=pl.BlockSpec((1, T, C), lambda b: (b, 0, 0)),
        ),
        compiler_params=pltpu.CompilerParams(
            dimension_semantics=("parallel",),
        ),
        cost_estimate=pl.CostEstimate(
            flops=flops,
            transcendentals=B * num_heads * T * T,
            bytes_accessed=bytes_accessed,
        ),
    )(x, wqkv_bf, wp_bf, bp_r)
    return out


def mha_reference(x, wqkv, wp, bp, num_heads):
    """Plain-JAX f32 reference matching the PyTorch module in eval mode."""
    B, T, C = x.shape
    D = C // num_heads
    scale = C ** -0.5
    qkv = x @ wqkv                                           # (B, T, 3C)
    q, k, v = qkv[..., :C], qkv[..., C:2 * C], qkv[..., 2 * C:]
    q = q.reshape(B, T, num_heads, D).transpose(0, 2, 1, 3)   # (B, H, T, D)
    k = k.reshape(B, T, num_heads, D).transpose(0, 2, 1, 3)
    v = v.reshape(B, T, num_heads, D).transpose(0, 2, 1, 3)
    scores = jnp.einsum("bhtd,bhsd->bhts", q, k) * scale
    mask = jnp.tril(jnp.ones((T, T), dtype=bool))
    scores = jnp.where(mask, scores, -jnp.inf)
    wei = jax.nn.softmax(scores, axis=-1)
    out = jnp.einsum("bhts,bhsd->bhtd", wei, v)               # (B, H, T, D)
    cat = out.transpose(0, 2, 1, 3).reshape(B, T, C)          # (B, T, C)
    return cat @ wp + bp


def init_params(key, n_embd, num_heads, dtype=jnp.float32):
    """Deterministic init mimicking nn.Linear (weights stored transposed).

    Q/K/V are packed head-major into a fused (n_embd, 3*n_embd) weight:
    columns [0:C] = Q for all heads, [C:2C] = K, [2C:3C] = V; within each
    block, head h occupies columns h*D:(h+1)*D.
    """
    del num_heads  # layout is head-major by construction of the column blocks
    kq, kk, kv, kp, kb = jax.random.split(key, 5)
    lim = 1.0 / math.sqrt(n_embd)
    wq = jax.random.uniform(kq, (n_embd, n_embd), dtype, -lim, lim)
    wk = jax.random.uniform(kk, (n_embd, n_embd), dtype, -lim, lim)
    wv = jax.random.uniform(kv, (n_embd, n_embd), dtype, -lim, lim)
    wqkv = jnp.concatenate([wq, wk, wv], axis=-1)            # (C, 3C)
    wp = jax.random.uniform(kp, (n_embd, n_embd), dtype, -lim, lim)  # = Wproj.T
    bp = jax.random.uniform(kb, (n_embd,), dtype, -lim, lim)
    return wqkv, wp, bp


if __name__ == "__main__":
    B, T = 2, 8
    n_embd = 32
    num_heads = 4          # head_size = 8; block_size = 8 (mask via in-kernel iota)

    key = jax.random.PRNGKey(0)
    kx, kp = jax.random.split(key)

    x = jax.random.normal(kx, (B, T, n_embd), dtype=jnp.float32)
    wqkv, wp, bp = init_params(kp, n_embd, num_heads)

    out = multi_head_attention(x, wqkv, wp, bp, num_heads)
    out = jax.block_until_ready(out)

    ref = mha_reference(x, wqkv, wp, bp, num_heads)
    assert out.shape == (B, T, n_embd)
    # bf16 matmul operands (f32 accumulation) -> loosened tolerance.
    assert jnp.allclose(out, ref, atol=5e-2, rtol=5e-2), float(
        jnp.max(jnp.abs(out - ref)))

    print("KERNEL_OK")
</pallas_src>

<mosaic_0001>
module attributes {stable_mosaic.version = 11 : i64} {
  func.func @mha_kernel(%arg0: i32, %arg1: memref<1x8x32xf32, #tpu.memory_space<vmem>>, %arg2: memref<32x96xbf16, #tpu.memory_space<vmem>>, %arg3: memref<32x32xbf16, #tpu.memory_space<vmem>>, %arg4: memref<1x32xf32, #tpu.memory_space<vmem>>, %arg5: memref<1x8x32xf32, #tpu.memory_space<vmem>>) attributes {dimension_semantics = [#tpu.dimension_semantics<parallel>], iteration_bounds = array<i64: 2>, scalar_prefetch = 0 : i64, scratch_operands = 0 : i64, tpu.core_type = #tpu.core_type<tc>, window_params = [{transform_indices = @transform_0, window_bounds = array<i64: 1, 8, 32>}, {pipeline_mode = #tpu.pipeline_mode<synchronous>, transform_indices = @transform_1, window_bounds = array<i64: 32, 96>}, {pipeline_mode = #tpu.pipeline_mode<synchronous>, transform_indices = @transform_2, window_bounds = array<i64: 32, 32>}, {pipeline_mode = #tpu.pipeline_mode<synchronous>, transform_indices = @transform_3, window_bounds = array<i64: 1, 32>}, {transform_indices = @transform_4, window_bounds = array<i64: 1, 8, 32>}]} {
    %c0 = arith.constant 0 : index
    %c0_0 = arith.constant 0 : index
    %c0_1 = arith.constant 0 : index
    %0 = vector.load %arg1[%c0, %c0_0, %c0_1] : memref<1x8x32xf32, #tpu.memory_space<vmem>>, vector<1x8x32xf32>
    %1 = vector.shape_cast %0 : vector<1x8x32xf32> to vector<8x32xf32>
    %2 = arith.truncf %1 : vector<8x32xf32> to vector<8x32xbf16>
    %c0_2 = arith.constant 0 : index
    %c0_3 = arith.constant 0 : index
    %3 = vector.load %arg2[%c0_2, %c0_3] : memref<32x96xbf16, #tpu.memory_space<vmem>>, vector<32x96xbf16>
    %cst = arith.constant dense<0.000000e+00> : vector<8x96xf32>
    %4 = tpu.matmul %2, %3, %cst {dimension_numbers = #tpu.dot_dimension_numbers<[1], [0], [0], [1], [0, 0, 1, 1], [], []>} : vector<8x32xbf16>, vector<32x96xbf16>, vector<8x96xf32> -> vector<8x96xf32>
    %5 = vector.extract_strided_slice %4 {offsets = [0, 0], sizes = [8, 32], strides = [1, 1]} : vector<8x96xf32> to vector<8x32xf32>
    %cst_4 = arith.constant 0.176776692 : f32
    %6 = vector.broadcast %cst_4 : f32 to vector<8x32xf32>
    %7 = arith.mulf %5, %6 : vector<8x32xf32>
    %8 = arith.truncf %7 : vector<8x32xf32> to vector<8x32xbf16>
    %9 = vector.extract_strided_slice %4 {offsets = [0, 32], sizes = [8, 32], strides = [1, 1]} : vector<8x96xf32> to vector<8x32xf32>
    %10 = arith.truncf %9 : vector<8x32xf32> to vector<8x32xbf16>
    %11 = vector.extract_strided_slice %4 {offsets = [0, 64], sizes = [8, 32], strides = [1, 1]} : vector<8x96xf32> to vector<8x32xf32>
    %12 = arith.truncf %11 : vector<8x32xf32> to vector<8x32xbf16>
    %13 = tpu.iota {dimensions = array<i32: 0>} : vector<8x8xi32>
    %14 = tpu.iota {dimensions = array<i32: 1>} : vector<8x8xi32>
    %15 = arith.cmpi sle, %14, %13 : vector<8x8xi32>
    %16 = vector.extract_strided_slice %8 {offsets = [0, 0], sizes = [8, 8], strides = [1, 1]} : vector<8x32xbf16> to vector<8x8xbf16>
    %17 = vector.extract_strided_slice %10 {offsets = [0, 0], sizes = [8, 8], strides = [1, 1]} : vector<8x32xbf16> to vector<8x8xbf16>
    %18 = vector.extract_strided_slice %12 {offsets = [0, 0], sizes = [8, 8], strides = [1, 1]} : vector<8x32xbf16> to vector<8x8xbf16>
    %cst_5 = arith.constant dense<0.000000e+00> : vector<8x8xf32>
    %19 = tpu.matmul %16, %17, %cst_5 {dimension_numbers = #tpu.dot_dimension_numbers<[1], [1], [0], [0], [0, 0, 1, 0], [], []>} : vector<8x8xbf16>, vector<8x8xbf16>, vector<8x8xf32> -> vector<8x8xf32>
    %cst_6 = arith.constant 0xFF800000 : f32
    %20 = vector.broadcast %cst_6 : f32 to vector<8x8xf32>
    %21 = arith.select %15, %19, %20 : vector<8x8xi1>, vector<8x8xf32>
    %cst_7 = arith.constant dense<0xFF800000> : vector<8xf32>
    %22 = vector.multi_reduction <maximumf>, %21, %cst_7 [1] : vector<8x8xf32> to vector<8xf32>
    %23 = vector.shape_cast %22 : vector<8xf32> to vector<8x1xf32>
    %24 = vector.broadcast %23 : vector<8x1xf32> to vector<8x8xf32>
    %25 = arith.subf %21, %24 : vector<8x8xf32>
    %26 = math.exp %25 : vector<8x8xf32>
    %cst_8 = arith.constant dense<0.000000e+00> : vector<8xf32>
    %27 = vector.multi_reduction <add>, %26, %cst_8 [1] : vector<8x8xf32> to vector<8xf32>
    %28 = vector.shape_cast %27 : vector<8xf32> to vector<8x1xf32>
    %29 = arith.truncf %26 : vector<8x8xf32> to vector<8x8xbf16>
    %cst_9 = arith.constant dense<0.000000e+00> : vector<8x8xf32>
    %30 = tpu.matmul %29, %18, %cst_9 {dimension_numbers = #tpu.dot_dimension_numbers<[1], [0], [0], [1], [0, 0, 1, 1], [], []>} : vector<8x8xbf16>, vector<8x8xbf16>, vector<8x8xf32> -> vector<8x8xf32>
    %31 = tpu.reciprocal %28 {approx = true} : vector<8x1xf32> -> vector<8x1xf32>
    %32 = vector.broadcast %31 : vector<8x1xf32> to vector<8x8xf32>
    %33 = arith.mulf %30, %32 : vector<8x8xf32>
    %34 = vector.extract_strided_slice %8 {offsets = [0, 8], sizes = [8, 8], strides = [1, 1]} : vector<8x32xbf16> to vector<8x8xbf16>
    %35 = vector.extract_strided_slice %10 {offsets = [0, 8], sizes = [8, 8], strides = [1, 1]} : vector<8x32xbf16> to vector<8x8xbf16>
    %36 = vector.extract_strided_slice %12 {offsets = [0, 8], sizes = [8, 8], strides = [1, 1]} : vector<8x32xbf16> to vector<8x8xbf16>
    %cst_10 = arith.constant dense<0.000000e+00> : vector<8x8xf32>
    %37 = tpu.matmul %34, %35, %cst_10 {dimension_numbers = #tpu.dot_dimension_numbers<[1], [1], [0], [0], [0, 0, 1, 0], [], []>} : vector<8x8xbf16>, vector<8x8xbf16>, vector<8x8xf32> -> vector<8x8xf32>
    %cst_11 = arith.constant 0xFF800000 : f32
    %38 = vector.broadcast %cst_11 : f32 to vector<8x8xf32>
    %39 = arith.select %15, %37, %38 : vector<8x8xi1>, vector<8x8xf32>
    %cst_12 = arith.constant dense<0xFF800000> : vector<8xf32>
    %40 = vector.multi_reduction <maximumf>, %39, %cst_12 [1] : vector<8x8xf32> to vector<8xf32>
    %41 = vector.shape_cast %40 : vector<8xf32> to vector<8x1xf32>
    %42 = vector.broadcast %41 : vector<8x1xf32> to vector<8x8xf32>
    %43 = arith.subf %39, %42 : vector<8x8xf32>
    %44 = math.exp %43 : vector<8x8xf32>
    %cst_13 = arith.constant dense<0.000000e+00> : vector<8xf32>
    %45 = vector.multi_reduction <add>, %44, %cst_13 [1] : vector<8x8xf32> to vector<8xf32>
    %46 = vector.shape_cast %45 : vector<8xf32> to vector<8x1xf32>
    %47 = arith.truncf %44 : vector<8x8xf32> to vector<8x8xbf16>
    %cst_14 = arith.constant dense<0.000000e+00> : vector<8x8xf32>
    %48 = tpu.matmul %47, %36, %cst_14 {dimension_numbers = #tpu.dot_dimension_numbers<[1], [0], [0], [1], [0, 0, 1, 1], [], []>} : vector<8x8xbf16>, vector<8x8xbf16>, vector<8x8xf32> -> vector<8x8xf32>
    %49 = tpu.reciprocal %46 {approx = true} : vector<8x1xf32> -> vector<8x1xf32>
    %50 = vector.broadcast %49 : vector<8x1xf32> to vector<8x8xf32>
    %51 = arith.mulf %48, %50 : vector<8x8xf32>
    %52 = vector.extract_strided_slice %8 {offsets = [0, 16], sizes = [8, 8], strides = [1, 1]} : vector<8x32xbf16> to vector<8x8xbf16>
    %53 = vector.extract_strided_slice %10 {offsets = [0, 16], sizes = [8, 8], strides = [1, 1]} : vector<8x32xbf16> to vector<8x8xbf16>
    %54 = vector.extract_strided_slice %12 {offsets = [0, 16], sizes = [8, 8], strides = [1, 1]} : vector<8x32xbf16> to vector<8x8xbf16>
    %cst_15 = arith.constant dense<0.000000e+00> : vector<8x8xf32>
    %55 = tpu.matmul %52, %53, %cst_15 {dimension_numbers = #tpu.dot_dimension_numbers<[1], [1], [0], [0], [0, 0, 1, 0], [], []>} : vector<8x8xbf16>, vector<8x8xbf16>, vector<8x8xf32> -> vector<8x8xf32>
    %cst_16 = arith.constant 0xFF800000 : f32
    %56 = vector.broadcast %cst_16 : f32 to vector<8x8xf32>
    %57 = arith.select %15, %55, %56 : vector<8x8xi1>, vector<8x8xf32>
    %cst_17 = arith.constant dense<0xFF800000> : vector<8xf32>
    %58 = vector.multi_reduction <maximumf>, %57, %cst_17 [1] : vector<8x8xf32> to vector<8xf32>
    %59 = vector.shape_cast %58 : vector<8xf32> to vector<8x1xf32>
    %60 = vector.broadcast %59 : vector<8x1xf32> to vector<8x8xf32>
    %61 = arith.subf %57, %60 : vector<8x8xf32>
    %62 = math.exp %61 : vector<8x8xf32>
    %cst_18 = arith.constant dense<0.000000e+00> : vector<8xf32>
    %63 = vector.multi_reduction <add>, %62, %cst_18 [1] : vector<8x8xf32> to vector<8xf32>
    %64 = vector.shape_cast %63 : vector<8xf32> to vector<8x1xf32>
    %65 = arith.truncf %62 : vector<8x8xf32> to vector<8x8xbf16>
    %cst_19 = arith.constant dense<0.000000e+00> : vector<8x8xf32>
    %66 = tpu.matmul %65, %54, %cst_19 {dimension_numbers = #tpu.dot_dimension_numbers<[1], [0], [0], [1], [0, 0, 1, 1], [], []>} : vector<8x8xbf16>, vector<8x8xbf16>, vector<8x8xf32> -> vector<8x8xf32>
    %67 = tpu.reciprocal %64 {approx = true} : vector<8x1xf32> -> vector<8x1xf32>
    %68 = vector.broadcast %67 : vector<8x1xf32> to vector<8x8xf32>
    %69 = arith.mulf %66, %68 : vector<8x8xf32>
    %70 = vector.extract_strided_slice %8 {offsets = [0, 24], sizes = [8, 8], strides = [1, 1]} : vector<8x32xbf16> to vector<8x8xbf16>
    %71 = vector.extract_strided_slice %10 {offsets = [0, 24], sizes = [8, 8], strides = [1, 1]} : vector<8x32xbf16> to vector<8x8xbf16>
    %72 = vector.extract_strided_slice %12 {offsets = [0, 24], sizes = [8, 8], strides = [1, 1]} : vector<8x32xbf16> to vector<8x8xbf16>
    %cst_20 = arith.constant dense<0.000000e+00> : vector<8x8xf32>
    %73 = tpu.matmul %70, %71, %cst_20 {dimension_numbers = #tpu.dot_dimension_numbers<[1], [1], [0], [0], [0, 0, 1, 0], [], []>} : vector<8x8xbf16>, vector<8x8xbf16>, vector<8x8xf32> -> vector<8x8xf32>
    %cst_21 = arith.constant 0xFF800000 : f32
    %74 = vector.broadcast %cst_21 : f32 to vector<8x8xf32>
    %75 = arith.select %15, %73, %74 : vector<8x8xi1>, vector<8x8xf32>
    %cst_22 = arith.constant dense<0xFF800000> : vector<8xf32>
    %76 = vector.multi_reduction <maximumf>, %75, %cst_22 [1] : vector<8x8xf32> to vector<8xf32>
    %77 = vector.shape_cast %76 : vector<8xf32> to vector<8x1xf32>
    %78 = vector.broadcast %77 : vector<8x1xf32> to vector<8x8xf32>
    %79 = arith.subf %75, %78 : vector<8x8xf32>
    %80 = math.exp %79 : vector<8x8xf32>
    %cst_23 = arith.constant dense<0.000000e+00> : vector<8xf32>
    %81 = vector.multi_reduction <add>, %80, %cst_23 [1] : vector<8x8xf32> to vector<8xf32>
    %82 = vector.shape_cast %81 : vector<8xf32> to vector<8x1xf32>
    %83 = arith.truncf %80 : vector<8x8xf32> to vector<8x8xbf16>
    %cst_24 = arith.constant dense<0.000000e+00> : vector<8x8xf32>
    %84 = tpu.matmul %83, %72, %cst_24 {dimension_numbers = #tpu.dot_dimension_numbers<[1], [0], [0], [1], [0, 0, 1, 1], [], []>} : vector<8x8xbf16>, vector<8x8xbf16>, vector<8x8xf32> -> vector<8x8xf32>
    %85 = tpu.reciprocal %82 {approx = true} : vector<8x1xf32> -> vector<8x1xf32>
    %86 = vector.broadcast %85 : vector<8x1xf32> to vector<8x8xf32>
    %87 = arith.mulf %84, %86 : vector<8x8xf32>
    %88 = tpu.concatenate %33, %51, %69, %87 in 1 : vector<8x8xf32>, vector<8x8xf32>, vector<8x8xf32>, vector<8x8xf32> -> vector<8x32xf32>
    %89 = arith.truncf %88 : vector<8x32xf32> to vector<8x32xbf16>
    %c0_25 = arith.constant 0 : index
    %c0_26 = arith.constant 0 : index
    %90 = vector.load %arg3[%c0_25, %c0_26] : memref<32x32xbf16, #tpu.memory_space<vmem>>, vector<32x32xbf16>
    %cst_27 = arith.constant dense<0.000000e+00> : vector<8x32xf32>
    %91 = tpu.matmul %89, %90, %cst_27 {dimension_numbers = #tpu.dot_dimension_numbers<[1], [0], [0], [1], [0, 0, 1, 1], [], []>} : vector<8x32xbf16>, vector<32x32xbf16>, vector<8x32xf32> -> vector<8x32xf32>
    %c0_28 = arith.constant 0 : index
    %c0_29 = arith.constant 0 : index
    %92 = vector.load %arg4[%c0_28, %c0_29] : memref<1x32xf32, #tpu.memory_space<vmem>>, vector<1x32xf32>
    %93 = vector.broadcast %92 : vector<1x32xf32> to vector<8x32xf32>
    %94 = arith.addf %91, %93 : vector<8x32xf32>
    %c0_30 = arith.constant 0 : index
    %c0_31 = arith.constant 0 : index
    %c0_32 = arith.constant 0 : index
    %95 = vector.load %arg5[%c0_30, %c0_31, %c0_32] : memref<1x8x32xf32, #tpu.memory_space<vmem>>, vector<1x8x32xf32>
    %96 = vector.shape_cast %95 : vector<1x8x32xf32> to vector<8x32xf32>
    %97 = vector.shape_cast %94 : vector<8x32xf32> to vector<1x8x32xf32>
    tpu.vector_store %arg5[%c0_30, %c0_31, %c0_32], %97 {strides = array<i32>} : memref<1x8x32xf32, #tpu.memory_space<vmem>>, vector<1x8x32xf32>,
    return
  }
  func.func @transform_0(%arg0: i32) -> (i32, i32, i32) {
    %c0_i32 = arith.constant 0 : i32
    %c0_i32_0 = arith.constant 0 : i32
    %c0_i32_1 = arith.constant 0 : i32
    return %arg0, %c0_i32, %c0_i32_0 : i32, i32, i32
  }
  func.func @transform_1(%arg0: i32) -> (i32, i32) {
    %c0_i32 = arith.constant 0 : i32
    %c0_i32_0 = arith.constant 0 : i32
    %c0_i32_1 = arith.constant 0 : i32
    return %c0_i32, %c0_i32_0 : i32, i32
  }
  func.func @transform_2(%arg0: i32) -> (i32, i32) {
    %c0_i32 = arith.constant 0 : i32
    %c0_i32_0 = arith.constant 0 : i32
    %c0_i32_1 = arith.constant 0 : i32
    return %c0_i32, %c0_i32_0 : i32, i32
  }
  func.func @transform_3(%arg0: i32) -> (i32, i32) {
    %c0_i32 = arith.constant 0 : i32
    %c0_i32_0 = arith.constant 0 : i32
    %c0_i32_1 = arith.constant 0 : i32
    return %c0_i32, %c0_i32_0 : i32, i32
  }
  func.func @transform_4(%arg0: i32) -> (i32, i32, i32) {
    %c0_i32 = arith.constant 0 : i32
    %c0_i32_0 = arith.constant 0 : i32
    %c0_i32_1 = arith.constant 0 : i32
    return %arg0, %c0_i32, %c0_i32_0 : i32, i32, i32
  }
}

</mosaic_0001>

<llo_original>
// kernel: multi_head_attention.1
$region0: #{multi_head_attention.1}
  #allocation0 [shape = 'u32[]', space=smem, size = 0x4, offset = 0x4, fixed_abs, tag = 'smem constant byte address 0x4 - core index']
  #allocation1 [shape = 'u32[72,128]{1,0:T(1,128)}', space=vmem, size = 0x9000, scoped, tag = 'internal scratch']
  %s0 = inlined_call_operand.vmem [shape: f32[2,8,32], index: 0, kind: input, shape index: {}]
  %s1 = inlined_call_operand.vmem [shape: bf16[32,96], index: 1, kind: input, shape index: {}]
  %s2 = inlined_call_operand.vmem [shape: bf16[32,32], index: 2, kind: input, shape index: {}]
  %s3 = inlined_call_operand.vmem [shape: f32[1,32], index: 3, kind: input, shape index: {}]
  %s4 = inlined_call_operand.hbm [shape: f32[2,8,32], index: 4, kind: output, shape index: {}]
  %s5 = sld [smem:[#allocation0]]
  $region49: #{multi_head_attention.1} parent=0
    _
  %s7 = ssub.s32 1, %s5
  %s8 = scalar_select 0, %s7, %s5
  $region1: #{multi_head_attention.1} parent=0
    #allocation2 [shape = 'u8[8192]{0}', space=vmem, size = 0x2000, scoped, tag = 'output window, operand 0']
    #allocation3 [shape = 's32[2]{0}', space=sflag, size = 0x8, scoped, tag = 'scoped memory for multi_head_attention.1']
    %9 = vsyncpa [#allocation3], 0
    %s10 = scalar_lea.sflag [#allocation3], 1
    %11 = vsyncpa %s10, 0
    loop: start=0, step=1, limit=4
    $region2: #{multi_head_attention.1} parent=1 // loop_pre_header
      _
    $region3: #{multi_head_attention.1} parent=1 // loop_header
      %s13 = sphi 0, %s17
      %p14 = scmp.ge.s32.totalorder %s13, 4
      %s23 = sphi 0, %s25
      %s26 = sphi 0, %s23
      %s27 = sphi 0, %s26
      %s43 = sphi 0, %s27
      %s47 = sphi 0, %s47
      %s49 = sphi 0, %s47
      %s50 = sphi 0, %s49
      %s64 = sphi 0, %s50
      %s68 = sphi 0, %s68
      %s70 = sphi 0, %s68
      %s71 = sphi 0, %s70
      %s85 = sphi 0, %s71
      %s89 = sphi 0, %s89
      %s91 = sphi 0, %s89
      %s92 = sphi 0, %s91
      %s106 = sphi 0, %s92
      %s112 = sphi 0, %s114
      %s115 = sphi 0, %s112
      %s116 = sphi 0, %s115
      %s132 = sphi 0, %s116
    $region4: #{multi_head_attention.1} parent=1 // loop_header_branch
      %16 = sbr.rel (%p14) target = $region8
    $region5: #{multi_head_attention.1} parent=1 // loop_body
      %s18 = ssub.s32 %s13, 1
      %s19 = ssub.s32 %s13, 2
      %s20 = sadd.s32 %s13, 1
      %s21 = ssub.s32 %s13, %s20
      %p22 = scmp.eq.s32.totalorder %s21, 0
      %s24 = sadd.s32 %s23, 1
      %s25 = scalar_select %p22, %s23, %s24
      %p28 = pneg %p22
      %p29 = scmp.eq.s32.totalorder %s13, 1
      %p30 = por %p28, %p29
      %p31 = scmp.ne.s32.totalorder %s23, %s26
      %p32 = scmp.eq.s32.totalorder %s13, 0
      %p33 = por %p31, %p32
      %p34 = scmp.ne.s32.totalorder %s23, %s26
      %p35 = scmp.eq.s32.totalorder %s18, 1
      %p36 = por %p34, %p35
      %p37 = scmp.ne.s32.totalorder %s26, %s27
      %p38 = scmp.eq.s32.totalorder %s18, 0
      %p39 = por %p37, %p38
      %p40 = scmp.ne.s32.totalorder %s26, %s27
      %p41 = scmp.eq.s32.totalorder %s19, 1
      %p42 = por %p40, %p41
      %p44 = scmp.ne.s32.totalorder %s27, %s43
      %p45 = scmp.eq.s32.totalorder %s19, 0
      %p46 = por %p44, %p45
      %s48 = sadd.s32 %s47, 1
      %p51 = scmp.eq.s32.totalorder %s13, 1
      %p52 = scmp.ne.s32.totalorder %s47, %s49
      %p53 = scmp.eq.s32.totalorder %s13, 0
      %p54 = por %p52, %p53
      %p55 = scmp.ne.s32.totalorder %s47, %s49
      %p56 = scmp.eq.s32.totalorder %s18, 1
      %p57 = por %p55, %p56
      %p58 = scmp.ne.s32.totalorder %s49, %s50
      %p59 = scmp.eq.s32.totalorder %s18, 0
      %p60 = por %p58, %p59
      %p61 = scmp.ne.s32.totalorder %s49, %s50
      %p62 = scmp.eq.s32.totalorder %s19, 1
      %p63 = por %p61, %p62
      %p65 = scmp.ne.s32.totalorder %s50, %s64
      %p66 = scmp.eq.s32.totalorder %s19, 0
      %p67 = por %p65, %p66
      %s69 = sadd.s32 %s68, 1
      %p72 = scmp.eq.s32.totalorder %s13, 1
      %p73 = scmp.ne.s32.totalorder %s68, %s70
      %p74 = scmp.eq.s32.totalorder %s13, 0
      %p75 = por %p73, %p74
      %p76 = scmp.ne.s32.totalorder %s68, %s70
      %p77 = scmp.eq.s32.totalorder %s18, 1
      %p78 = por %p76, %p77
      %p79 = scmp.ne.s32.totalorder %s70, %s71
      %p80 = scmp.eq.s32.totalorder %s18, 0
      %p81 = por %p79, %p80
      %p82 = scmp.ne.s32.totalorder %s70, %s71
      %p83 = scmp.eq.s32.totalorder %s19, 1
      %p84 = por %p82, %p83
      %p86 = scmp.ne.s32.totalorder %s71, %s85
      %p87 = scmp.eq.s32.totalorder %s19, 0
      %p88 = por %p86, %p87
      %s90 = sadd.s32 %s89, 1
      %p93 = scmp.eq.s32.totalorder %s13, 1
      %p94 = scmp.ne.s32.totalorder %s89, %s91
      %p95 = scmp.eq.s32.totalorder %s13, 0
      %p96 = por %p94, %p95
      %p97 = scmp.ne.s32.totalorder %s89, %s91
      %p98 = scmp.eq.s32.totalorder %s18, 1
      %p99 = por %p97, %p98
      %p100 = scmp.ne.s32.totalorder %s91, %s92
      %p101 = scmp.eq.s32.totalorder %s18, 0
      %p102 = por %p100, %p101
      %p103 = scmp.ne.s32.totalorder %s91, %s92
      %p104 = scmp.eq.s32.totalorder %s19, 1
      %p105 = por %p103, %p104
      %p107 = scmp.ne.s32.totalorder %s92, %s106
      %p108 = scmp.eq.s32.totalorder %s19, 0
      %p109 = por %p107, %p108
      %s110 = ssub.s32 %s13, %s20
      %p111 = scmp.eq.s32.totalorder %s110, 0
      %s113 = sadd.s32 %s112, 1
      %s114 = scalar_select %p111, %s112, %s113
      %p117 = pneg %p111
      %p118 = scmp.eq.s32.totalorder %s13, 1
      %p119 = por %p117, %p118
      %p120 = scmp.ne.s32.totalorder %s112, %s115
      %p121 = scmp.eq.s32.totalorder %s13, 0
      %p122 = por %p120, %p121
      %p123 = scmp.ne.s32.totalorder %s112, %s115
      %p124 = scmp.eq.s32.totalorder %s18, 1
      %p125 = por %p123, %p124
      %p126 = scmp.ne.s32.totalorder %s115, %s116
      %p127 = scmp.eq.s32.totalorder %s18, 0
      %p128 = por %p126, %p127
      %p129 = scmp.ne.s32.totalorder %s115, %s116
      %p130 = scmp.eq.s32.totalorder %s19, 1
      %p131 = por %p129, %p130
      %p133 = scmp.ne.s32.totalorder %s116, %s132
      %p134 = scmp.eq.s32.totalorder %s19, 0
      %p135 = por %p133, %p134
      %p136 = scmp.le.s32.totalorder 1, %s13
      %p137 = scmp.lt.s32.totalorder %s13, 3
      %p138 = pnand %p136, %p137
      %p139 = pneg %p138
      // Predicated region
      $region9: #{multi_head_attention.1} parent=5 // pred_check
        _
      $region10: #{multi_head_attention.1} parent=5 // pred_check_branch
        %141 = sbr.rel (%p138) target = $region12
      $region11: #{multi_head_attention.1} parent=5 // pred_region
        %s142 = ssub.s32 %s13, 1
        // Predicated region
        $region13: #{multi_head_attention.1} parent=11 // pred_check
          %p143 = pneg %p60
        $region14: #{multi_head_attention.1} parent=11 // pred_check_branch
          %145 = sbr.rel (%p143) target = $region16
        $region15: #{multi_head_attention.1} parent=11 // pred_region
          _
        $region16: #{multi_head_attention.1} parent=11 // pred_fallthru
          _
        // Predicated region
        $region17: #{multi_head_attention.1} parent=11 // pred_check
          %p146 = pneg %p81
        $region18: #{multi_head_attention.1} parent=11 // pred_check_branch
          %148 = sbr.rel (%p146) target = $region20
        $region19: #{multi_head_attention.1} parent=11 // pred_region
          _
        $region20: #{multi_head_attention.1} parent=11 // pred_fallthru
          _
        // Predicated region
        $region21: #{multi_head_attention.1} parent=11 // pred_check
          %p149 = pneg %p102
        $region22: #{multi_head_attention.1} parent=11 // pred_check_branch
          %151 = sbr.rel (%p149) target = $region24
        $region23: #{multi_head_attention.1} parent=11 // pred_region
          _
        $region24: #{multi_head_attention.1} parent=11 // pred_fallthru
          _
      $region12: #{multi_head_attention.1} parent=5 // pred_fallthru
        _
      %p152 = scmp.lt.s32.totalorder %s13, 2
      // Predicated region
      $region25: #{multi_head_attention.1} parent=5 // pred_check
        %p153 = pneg %p152
      $region26: #{multi_head_attention.1} parent=5 // pred_check_branch
        %155 = sbr.rel (%p153) target = $region28
      $region27: #{multi_head_attention.1} parent=5 // pred_region
        // Predicated region
        $region29: #{multi_head_attention.1} parent=27 // pred_check
          %p156 = pneg %p33
        $region30: #{multi_head_attention.1} parent=27 // pred_check_branch
          %158 = sbr.rel (%p156) target = $region32
        $region31: #{multi_head_attention.1} parent=27 // pred_region
          %p159 = scmp.lt.s32.totalorder %s13, 1
          %s160 = scalar_select %p159, %s13, 1
          %s161 = smul.addr %s160, 8
          %s162 = scalar_lea.vmem %s0, %s161
        $region32: #{multi_head_attention.1} parent=27 // pred_fallthru
          _
      $region28: #{multi_head_attention.1} parent=5 // pred_fallthru
        _
      %p163 = scmp.le.s32.totalorder 1, %s13
      %p164 = scmp.lt.s32.totalorder %s13, 3
      %p165 = pnand %p163, %p164
      %p166 = pneg %p165
      // Predicated region
      $region33: #{multi_head_attention.1} parent=5 // pred_check
        _
      $region34: #{multi_head_attention.1} parent=5 // pred_check_branch
        %168 = sbr.rel (%p165) target = $region36
      $region35: #{multi_head_attention.1} parent=5 // pred_region
        %s169 = ssub.s32 %s13, 1
        %p170 = scmp.lt.s32.totalorder %s18, 1
        %s171 = scalar_select %p170, %s18, 1
        %s172 = smul.addr %s171, 8
        %s173 = scalar_lea.vmem %s0, %s172
        %p174 = pneg %p39
        %p175 = pneg %p36
        %p176 = pneg %p60
        %p177 = pneg %p57
        %p178 = pneg %p81
        %p179 = pneg %p78
        %p180 = pneg %p102
        %p181 = pneg %p99
        %p182 = pneg %p128
        %p183 = pneg %p125
        %s184 = sand.u32 %s115, 1
        %s185 = scalar_lea.sflag [#allocation3], %s184
        %s186 = sand.u32 %s115, 1
        %s187 = smul.addr %s186, 8
        %s188 = scalar_lea.vmem [#allocation2], %s187
        %p189 = scmp.lt.s32.totalorder %s18, 1
        %s190 = scalar_select %p189, %s18, 1
        %s191 = smul.addr %s190, 8
        %s192 = scalar_lea.vmem %s0, %s191
        %v194 = vld [vmem:[%s192] sm:$0xff]
        %v195 = vpack.c.bf16 %v194, %v194
        %v196 = vld [vmem:[%s1] sm:$0xf]
        %v197 = vld [vmem:[%s1 + $0x4] sm:$0xf]
        %v198 = vld [vmem:[%s1 + $0x8] sm:$0xf]
        %v199 = vld [vmem:[%s1 + $0xc] sm:$0xf]
        %v204 = vunpack.c.l.b16 %v196
        %v205 = vunpack.c.l.b16 %v197
        %v206 = vunpack.c.l.b16 %v198
        %v207 = vunpack.c.l.b16 %v199
        %v208 = vpack.c.b16 %v205, %v204
        %v209 = vpack.c.b16 %v207, %v206
        %vm212 = vcmask 261120
        %v214 = vsel %vm212, %v195, 0
        %216 = vmatpush.bf16.msra.mxu0 0
        %217 = vmatpush.bf16.msra.mxu0 0
        %218 = vmatpush.bf16.msra.mxu0 0
        %219 = vmatpush.bf16.msra.mxu0 0
        %220 = vmatpush.bf16.msra.mxu0 0
        %221 = vmatpush.bf16.msra.mxu0 0
        %222 = vmatpush.bf16.msra.mxu0 %v209
        %223 = vmatpush.bf16.msra.mxu0 %v208
        %224 = vmatmul.bf16.gmra.mxu0 %v214
        %v225 = vpop.f32.mrf.mxu0
        %v226 = vadd.f32 0.0, %v225
        %v227 = vpop.f32.mrf.mxu0
        %228 = vdwg.mxu0
        %v229 = vmul.f32 %v226, 0.17677669
        %v230 = vpack.c.bf16 %v229, %v229
        %v231 = vpack.c.bf16 %v226, %v226
        %v232 = vlaneseq
        %v233 = vshrl.u32 %v232, 7
        %v234 = vlaneseq
        %v235 = vand.u32 %v234, 127
        %vm236 = vcmp.le.s32.totalorder %v235, %v233
        %v238 = vunpack.c.l.b16 %v231
        %v239 = vpack.c.b16 %v238, %v238
        %240 = vrot.lane.b32.xlu0 %v239, 96
        %v241 = vpop.permute.xlu0 %240
        %vm242 = vcmask 64512
        %v244 = vsel %vm242, %v230, 0
        %v247 = vsel %vm242, %v241, 0
        %249 = vmatpush.bf16.xpose.msra.mxu0 0
        %250 = vmatpush.bf16.xpose.msra.mxu0 0
        %251 = vmatpush.bf16.xpose.msra.mxu0 0
        %252 = vmatpush.bf16.xpose.msra.mxu0 0
        %253 = vmatpush.bf16.xpose.msra.mxu0 0
        %254 = vmatpush.bf16.xpose.msra.mxu0 0
        %255 = vmatpush.bf16.xpose.msra.mxu0 0
        %256 = vmatpush.bf16.xpose.msra.mxu0 %v247
        %257 = vmatmul.bf16.gmra.mxu0 %v244
        %v258 = vpop.f32.mrf.mxu0
        %v259 = vadd.f32 0.0, %v258
        %v260 = vpop.f32.mrf.mxu0
        %261 = vdwg.mxu0
        %v262 = vsel %vm236, %v259, -inf
        %v263 = vsel %vm242, %v262, -inf
        %264 = vmax.xlane.f32.xlu0 %v263
        %v265 = vpop.xlane.xlu0 %264
        %v266 = vsub.f32 %v262, %v265
        %v267 = vmul.f32 %v266, 1.442695
        %v268 = vpow.pop %v267
        %v269 = vsel %vm242, %v268, 0.0
        %270 = vadd.xlane.f32.xlu0 %v269
        %v271 = vpop.xlane.xlu0 %270
        %v272 = vpack.c.bf16 %v268, %v268
        %273 = vrot.lane.b32.xlu0 %v239, 64
        %v274 = vpop.permute.xlu0 %273
        %v276 = vsel %vm242, %v272, 0
        %vm278 = vcmask 1043456
        %v280 = vsel %vm278, %v274, 0
        %282 = vmatpush.bf16.msra.mxu0 0
        %283 = vmatpush.bf16.msra.mxu0 0
        %284 = vmatpush.bf16.msra.mxu0 0
        %285 = vmatpush.bf16.msra.mxu0 0
        %286 = vmatpush.bf16.msra.mxu0 0
        %287 = vmatpush.bf16.msra.mxu0 0
        %288 = vmatpush.bf16.msra.mxu0 0
        %289 = vmatpush.bf16.msra.mxu0 %v280
        %290 = vmatmul.bf16.gmra.mxu0 %v276
        %v291 = vpop.f32.mrf.mxu0
        %v292 = vadd.f32 0.0, %v291
        %v293 = vpop.f32.mrf.mxu0
        %294 = vdwg.mxu0
        %v295 = vrcp.pop %v271
        %v296 = vmul.f32 %v292, %v295
        %v298 = vunpack.c.l.b16 %v230
        %v299 = vpack.c.b16 %v298, %v298
        %300 = vrot.lane.b32.xlu0 %v299, 120
        %v301 = vpop.permute.xlu0 %300
        %302 = vrot.lane.b32.xlu0 %v239, 88
        %v303 = vpop.permute.xlu0 %302
        %v305 = vsel %vm242, %v301, 0
        %v308 = vsel %vm242, %v303, 0
        %310 = vmatpush.bf16.xpose.msra.mxu0 0
        %311 = vmatpush.bf16.xpose.msra.mxu0 0
        %312 = vmatpush.bf16.xpose.msra.mxu0 0
        %313 = vmatpush.bf16.xpose.msra.mxu0 0
        %314 = vmatpush.bf16.xpose.msra.mxu0 0
        %315 = vmatpush.bf16.xpose.msra.mxu0 0
        %316 = vmatpush.bf16.xpose.msra.mxu0 0
        %317 = vmatpush.bf16.xpose.msra.mxu0 %v308
        %318 = vmatmul.bf16.gmra.mxu0 %v305
        %v319 = vpop.f32.mrf.mxu0
        %v320 = vadd.f32 0.0, %v319
        %v321 = vpop.f32.mrf.mxu0
        %322 = vdwg.mxu0
        %v323 = vsel %vm236, %v320, -inf
        %v324 = vsel %vm242, %v323, -inf
        %325 = vmax.xlane.f32.xlu0 %v324
        %v326 = vpop.xlane.xlu0 %325
        %v327 = vsub.f32 %v323, %v326
        %v328 = vmul.f32 %v327, 1.442695
        %v329 = vpow.pop %v328
        %v330 = vsel %vm242, %v329, 0.0
        %331 = vadd.xlane.f32.xlu0 %v330
        %v332 = vpop.xlane.xlu0 %331
        %v333 = vpack.c.bf16 %v329, %v329
        %334 = vrot.lane.b32.xlu0 %v239, 56
        %v335 = vpop.permute.xlu0 %334
        %v337 = vsel %vm242, %v333, 0
        %v340 = vsel %vm278, %v335, 0
        %342 = vmatpush.bf16.msra.mxu0 0
        %343 = vmatpush.bf16.msra.mxu0 0
        %344 = vmatpush.bf16.msra.mxu0 0
        %345 = vmatpush.bf16.msra.mxu0 0
        %346 = vmatpush.bf16.msra.mxu0 0
        %347 = vmatpush.bf16.msra.mxu0 0
        %348 = vmatpush.bf16.msra.mxu0 0
        %349 = vmatpush.bf16.msra.mxu0 %v340
        %350 = vmatmul.bf16.gmra.mxu0 %v337
        %v351 = vpop.f32.mrf.mxu0
        %v352 = vadd.f32 0.0, %v351
        %v353 = vpop.f32.mrf.mxu0
        %354 = vdwg.mxu0
        %v355 = vrcp.pop %v332
        %v356 = vmul.f32 %v352, %v355
        %357 = vrot.lane.b32.xlu0 %v299, 112
        %v358 = vpop.permute.xlu0 %357
        %359 = vrot.lane.b32.xlu0 %v239, 80
        %v360 = vpop.permute.xlu0 %359
        %v362 = vsel %vm242, %v358, 0
        %v365 = vsel %vm242, %v360, 0
        %367 = vmatpush.bf16.xpose.msra.mxu0 0
        %368 = vmatpush.bf16.xpose.msra.mxu0 0
        %369 = vmatpush.bf16.xpose.msra.mxu0 0
        %370 = vmatpush.bf16.xpose.msra.mxu0 0
        %371 = vmatpush.bf16.xpose.msra.mxu0 0
        %372 = vmatpush.bf16.xpose.msra.mxu0 0
        %373 = vmatpush.bf16.xpose.msra.mxu0 0
        %374 = vmatpush.bf16.xpose.msra.mxu0 %v365
        %375 = vmatmul.bf16.gmra.mxu0 %v362
        %v376 = vpop.f32.mrf.mxu0
        %v377 = vadd.f32 0.0, %v376
        %v378 = vpop.f32.mrf.mxu0
        %379 = vdwg.mxu0
        %v380 = vsel %vm236, %v377, -inf
        %v381 = vsel %vm242, %v380, -inf
        %382 = vmax.xlane.f32.xlu0 %v381
        %v383 = vpop.xlane.xlu0 %382
        %v384 = vsub.f32 %v380, %v383
        %v385 = vmul.f32 %v384, 1.442695
        %v386 = vpow.pop %v385
        %v387 = vsel %vm242, %v386, 0.0
        %388 = vadd.xlane.f32.xlu0 %v387
        %v389 = vpop.xlane.xlu0 %388
        %v390 = vpack.c.bf16 %v386, %v386
        %391 = vrot.lane.b32.xlu0 %v239, 48
        %v392 = vpop.permute.xlu0 %391
        %v394 = vsel %vm242, %v390, 0
        %v397 = vsel %vm278, %v392, 0
        %399 = vmatpush.bf16.msra.mxu0 0
        %400 = vmatpush.bf16.msra.mxu0 0
        %401 = vmatpush.bf16.msra.mxu0 0
        %402 = vmatpush.bf16.msra.mxu0 0
        %403 = vmatpush.bf16.msra.mxu0 0
        %404 = vmatpush.bf16.msra.mxu0 0
        %405 = vmatpush.bf16.msra.mxu0 0
        %406 = vmatpush.bf16.msra.mxu0 %v397
        %407 = vmatmul.bf16.gmra.mxu0 %v394
        %v408 = vpop.f32.mrf.mxu0
        %v409 = vadd.f32 0.0, %v408
        %v410 = vpop.f32.mrf.mxu0
        %411 = vdwg.mxu0
        %v412 = vrcp.pop %v389
        %v413 = vmul.f32 %v409, %v412
        %414 = vrot.lane.b32.xlu0 %v299, 104
        %v415 = vpop.permute.xlu0 %414
        %416 = vrot.lane.b32.xlu0 %v239, 72
        %v417 = vpop.permute.xlu0 %416
        %v419 = vsel %vm242, %v415, 0
        %v422 = vsel %vm242, %v417, 0
        %424 = vmatpush.bf16.xpose.msra.mxu0 0
        %425 = vmatpush.bf16.xpose.msra.mxu0 0
        %426 = vmatpush.bf16.xpose.msra.mxu0 0
        %427 = vmatpush.bf16.xpose.msra.mxu0 0
        %428 = vmatpush.bf16.xpose.msra.mxu0 0
        %429 = vmatpush.bf16.xpose.msra.mxu0 0
        %430 = vmatpush.bf16.xpose.msra.mxu0 0
        %431 = vmatpush.bf16.xpose.msra.mxu0 %v422
        %432 = vmatmul.bf16.gmra.mxu0 %v419
        %v433 = vpop.f32.mrf.mxu0
        %v434 = vadd.f32 0.0, %v433
        %v435 = vpop.f32.mrf.mxu0
        %436 = vdwg.mxu0
        %v437 = vsel %vm236, %v434, -inf
        %v438 = vsel %vm242, %v437, -inf
        %439 = vmax.xlane.f32.xlu0 %v438
        %v440 = vpop.xlane.xlu0 %439
        %v441 = vsub.f32 %v437, %v440
        %v442 = vmul.f32 %v441, 1.442695
        %v443 = vpow.pop %v442
        %v444 = vsel %vm242, %v443, 0.0
        %445 = vadd.xlane.f32.xlu0 %v444
        %v446 = vpop.xlane.xlu0 %445
        %v447 = vpack.c.bf16 %v443, %v443
        %448 = vrot.lane.b32.xlu0 %v239, 40
        %v449 = vpop.permute.xlu0 %448
        %v451 = vsel %vm242, %v447, 0
        %v454 = vsel %vm278, %v449, 0
        %456 = vmatpush.bf16.msra.mxu0 0
        %457 = vmatpush.bf16.msra.mxu0 0
        %458 = vmatpush.bf16.msra.mxu0 0
        %459 = vmatpush.bf16.msra.mxu0 0
        %460 = vmatpush.bf16.msra.mxu0 0
        %461 = vmatpush.bf16.msra.mxu0 0
        %462 = vmatpush.bf16.msra.mxu0 0
        %463 = vmatpush.bf16.msra.mxu0 %v454
        %464 = vmatmul.bf16.gmra.mxu0 %v451
        %v465 = vpop.f32.mrf.mxu0
        %v466 = vadd.f32 0.0, %v465
        %v467 = vpop.f32.mrf.mxu0
        %468 = vdwg.mxu0
        %v469 = vrcp.pop %v446
        %v470 = vmul.f32 %v466, %v469
        %472 = vrot.lane.b32.xlu0 %v356, 8
        %v473 = vpop.permute.xlu0 %472
        %476 = vrot.lane.b32.xlu0 %v413, 16
        %v477 = vpop.permute.xlu0 %476
        %480 = vrot.lane.b32.xlu0 %v470, 24
        %v481 = vpop.permute.xlu0 %480
        %v483 = vsel %vm242, %v296, %v473
        %vm484 = vcmask 130048
        %v485 = vsel %vm484, %v483, %v477
        %vm486 = vcmask 195584
        %v487 = vsel %vm486, %v485, %v481
        %v488 = vpack.c.bf16 %v487, %v487
        %v489 = vld [vmem:[%s2] sm:$0xf]
        %v490 = vld [vmem:[%s2 + $0x4] sm:$0xf]
        %v491 = vld [vmem:[%s2 + $0x8] sm:$0xf]
        %v492 = vld [vmem:[%s2 + $0xc] sm:$0xf]
        %v493 = vld [vmem:[%s3] sm:$0x1]
        %v495 = vperm.slane %v493, 0
        %v501 = vunpack.c.l.b16 %v489
        %v502 = vunpack.c.l.b16 %v490
        %v503 = vunpack.c.l.b16 %v491
        %v504 = vunpack.c.l.b16 %v492
        %v505 = vpack.c.b16 %v502, %v501
        %v506 = vpack.c.b16 %v504, %v503
        %v510 = vsel %vm212, %v488, 0
        %512 = vmatpush.bf16.msra.mxu0 0
        %513 = vmatpush.bf16.msra.mxu0 0
        %514 = vmatpush.bf16.msra.mxu0 0
        %515 = vmatpush.bf16.msra.mxu0 0
        %516 = vmatpush.bf16.msra.mxu0 0
        %517 = vmatpush.bf16.msra.mxu0 0
        %518 = vmatpush.bf16.msra.mxu0 %v506
        %519 = vmatpush.bf16.msra.mxu0 %v505
        %520 = vmatmul.bf16.gmra.mxu0 %v510
        %v521 = vpop.f32.mrf.mxu0
        %v522 = vadd.f32 %v495, %v521
        %v523 = vpop.f32.mrf.mxu0
        %524 = vdwg.mxu0
        %525 = vst.msk [vmem:[%s188] sm:$0xff] %vm212, %v522
        %s526 = sand.u32 %s115, 1
        %s527 = scalar_lea.sflag [#allocation3], %s526
        %s528 = sand.u32 %s115, 1
        %s529 = smul.addr %s528, 8
        %s530 = scalar_lea.vmem [#allocation2], %s529
        // Predicated region
        $region37: #{multi_head_attention.1} parent=35 // pred_check
          %p531 = pneg %p125
        $region38: #{multi_head_attention.1} parent=35 // pred_check_branch
          %533 = sbr.rel (%p531) target = $region40
        $region39: #{multi_head_attention.1} parent=35 // pred_region
          %535 = vsyncadd %s527, 0
          %s536 = smul.addr %s18, 8
          %s537 = scalar_lea.hbm %s4, %s536
          %s539 = sshll.u32 %s530, 4
          %s540 = int_to_ptr.vmem [resolvable:$true] %s539
          %s541 = sshll.u32 %s537, 4
          %s542 = int_to_ptr.hbm [resolvable:$true] %s541
          %544 = dma.vmem_to_hbm [thread:$0]  %s540, 128, %s542, %s527
        $region40: #{multi_head_attention.1} parent=35 // pred_fallthru
          _
      $region36: #{multi_head_attention.1} parent=5 // pred_fallthru
        _
      %p545 = scmp.le.s32.totalorder 2, %s13
      // Predicated region
      $region41: #{multi_head_attention.1} parent=5 // pred_check
        %p546 = pneg %p545
      $region42: #{multi_head_attention.1} parent=5 // pred_check_branch
        %548 = sbr.rel (%p546) target = $region44
      $region43: #{multi_head_attention.1} parent=5 // pred_region
        %s549 = ssub.s32 %s13, 2
        // Predicated region
        $region45: #{multi_head_attention.1} parent=43 // pred_check
          %p550 = pneg %p131
        $region46: #{multi_head_attention.1} parent=43 // pred_check_branch
          %552 = sbr.rel (%p550) target = $region48
        $region47: #{multi_head_attention.1} parent=43 // pred_region
          %s553 = sand.u32 %s116, 1
          %s554 = scalar_lea.sflag [#allocation3], %s553
          %s555 = sand.u32 %s116, 1
          %s556 = smul.addr %s555, 8
          %s557 = scalar_lea.vmem [#allocation2], %s556
          %559 = dma.done %s554, 128
        $region48: #{multi_head_attention.1} parent=43 // pred_fallthru
          _
      $region44: #{multi_head_attention.1} parent=5 // pred_fallthru
        _
    $region6: #{multi_head_attention.1} parent=1 // loop_footer
      %s17 = sadd.s32 1, %s13
    $region7: #{multi_head_attention.1} parent=1 // loop_footer_branch
      %12 = sbr.rel target = $region3
    $region8: #{multi_head_attention.1} parent=1 // loop_exit
      _
    %560 = vsyncpa [#allocation3], 1
    %s561 = scalar_lea.sflag [#allocation3], 1
    %562 = vsyncpa %s561, 1

</llo_original>
